<compile_context>
chip_gen: v7x
topology: tpu7x:2x2x1
jax: 0.10.0
libtpu: 0.0.40
codegen_flags: <defaults>
</compile_context>

<pallas_src>
import numpy as np
import jax
import jax.numpy as jnp
from jax import lax
from jax.experimental import pallas as pl
from jax.experimental.pallas import tpu as pltpu

EPS = 1e-5  # PyTorch BatchNorm1d default


# ----------------------------- Pallas kernel --------------------------------
def cnn2fc_kernel(x_ref, w1_ref, s1_ref, wf_ref, sf_ref, w2_ref, bo_ref, o_ref):
    # x: (TB, L0) in its native batch-major layout.  The operand transpose happens
    # inside the dot_general (contracting x's dim 1), so every result tile is
    # batch-on-lanes and every VPU op / store is lane-dense.
    x = x_ref[...]
    # conv1 (+bias+BN folded) as one Toeplitz matmul                  -> (F1, TB)
    h1 = lax.dot_general(w1_ref[...], x, (((1,), (1,)), ((), ())),
                         preferred_element_type=jnp.float32)
    h1 = jnp.maximum(h1 + s1_ref[...], 0.0)            # f32 shift + ReLU
    # conv2 + Flatten + FC1 (+bias+BN folded) as one matmul           -> (H1, TB)
    z = jnp.dot(wf_ref[...], h1.astype(wf_ref.dtype),
                preferred_element_type=jnp.float32)
    z = jnp.maximum(z + sf_ref[...], 0.0)               # f32 shift + ReLU
    # FC2 (rows zero-padded to a full sublane tile)                   -> (O_pad, TB)
    o = jnp.dot(w2_ref[...], z.astype(w2_ref.dtype),
                preferred_element_type=jnp.float32) + bo_ref[...]
    o_ref[...] = o.astype(o_ref.dtype)


# ------------------------------- parameters ---------------------------------
def build_params(key, input_length=32, cnn_out_channels=(8, 8),
                 kernel_sizes=(3, 3), fc_nodes=(16, 4)):
    C1, C2 = cnn_out_channels
    K1, K2 = kernel_sizes
    H1, O = fc_nodes
    L0 = input_length
    L1 = L0 - K1 + 1
    L2 = L1 - K2 + 1
    cnn_out_dim = C2 * L2
    ks = jax.random.split(key, 14)
    # Non-identity BatchNorm stats / affine params so the fold math is actually tested.
    p = dict(
        L0=L0, L1=L1, L2=L2, C1=C1, C2=C2, K1=K1, K2=K2, H1=H1, O=O,
        w_conv1=jax.random.normal(ks[0], (C1, 1, K1), jnp.float32) / np.sqrt(1 * K1),
        b_conv1=0.1 * jax.random.normal(ks[1], (C1,), jnp.float32),
        bn1_gamma=1.0 + 0.2 * jax.random.normal(ks[2], (C1,), jnp.float32),
        bn1_beta=0.1 * jax.random.normal(ks[3], (C1,), jnp.float32),
        bn1_mean=0.5 * jax.random.normal(ks[4], (C1,), jnp.float32),
        bn1_var=jax.random.uniform(ks[5], (C1,), jnp.float32, 0.5, 1.5),
        w_conv2=jax.random.normal(ks[6], (C2, C1, K2), jnp.float32) / np.sqrt(C1 * K2),
        b_conv2=0.1 * jax.random.normal(ks[7], (C2,), jnp.float32),
        # he_initilization: kaiming-normal Linear weights, zero Linear biases
        w_fc1=jax.random.normal(ks[8], (H1, cnn_out_dim), jnp.float32) * np.sqrt(2.0 / cnn_out_dim),
        b_fc1=jnp.zeros((H1,), jnp.float32),
        fcbn_gamma=1.0 + 0.2 * jax.random.normal(ks[9], (H1,), jnp.float32),
        fcbn_beta=0.1 * jax.random.normal(ks[10], (H1,), jnp.float32),
        fcbn_mean=0.5 * jax.random.normal(ks[11], (H1,), jnp.float32),
        fcbn_var=jax.random.uniform(ks[12], (H1,), jnp.float32, 0.5, 1.5),
        w_fc2=jax.random.normal(ks[13], (O, H1), jnp.float32) * np.sqrt(2.0 / H1),
        b_fc2=jnp.zeros((O,), jnp.float32),
    )
    return p


def pack_params(p, compute_dtype=jnp.bfloat16):
    """Host-side (numpy, float64) algebraic fusion -> 3 weight matrices + 3 shifts.

    Weight matrices are emitted in `compute_dtype` (bf16 default: bf16-native MXU and
    half the input DMA bytes); shifts/biases stay f32 (f32 accumulation + f32 VPU).
    """
    f64 = lambda a: np.asarray(jax.device_get(a), dtype=np.float64)
    C1, C2, K1, K2 = p["C1"], p["C2"], p["K1"], p["K2"]
    L0, L1, L2, H1, O = p["L0"], p["L1"], p["L2"], p["H1"], p["O"]

    # --- conv1 as dense Toeplitz:  W1[c*L1 + l, l0] = w1[c, 0, l0 - l]
    w1 = f64(p["w_conv1"])[:, 0, :]                                   # (C1, K1)
    c = np.arange(C1)[:, None, None]
    l = np.arange(L1)[None, :, None]
    l0 = np.arange(L0)[None, None, :]
    t = l0 - l
    W1 = np.where((t >= 0) & (t < K1), w1[c, np.clip(t, 0, K1 - 1)], 0.0)
    W1 = W1.reshape(C1 * L1, L0)
    sc1 = f64(p["bn1_gamma"]) / np.sqrt(f64(p["bn1_var"]) + EPS)
    sh1 = (f64(p["b_conv1"]) - f64(p["bn1_mean"])) * sc1 + f64(p["bn1_beta"])
    W1 = W1 * np.repeat(sc1, L1)[:, None]                             # fold BN scale
    s1 = np.repeat(sh1, L1)[:, None]                                  # (C1*L1, 1)

    # --- conv2 Toeplitz:  T2[c1*L1 + l1, c2*L2 + l2] = w2[c2, c1, l1 - l2]
    w2 = f64(p["w_conv2"])                                            # (C2, C1, K2)
    c1 = np.arange(C1)[:, None, None, None]
    l1 = np.arange(L1)[None, :, None, None]
    c2 = np.arange(C2)[None, None, :, None]
    l2 = np.arange(L2)[None, None, None, :]
    t2 = l1 - l2
    T2 = np.where((t2 >= 0) & (t2 < K2), w2[c2, c1, np.clip(t2, 0, K2 - 1)], 0.0)
    T2 = T2.reshape(C1 * L1, C2 * L2)

    # --- fuse conv2 + Flatten (PyTorch (C,L) order) + FC1 + FC-BatchNorm
    fw1 = f64(p["w_fc1"])                                             # (H1, C2*L2)
    Wf = fw1 @ T2.T                                                   # (H1, C1*L1)
    b_eff = fw1 @ np.repeat(f64(p["b_conv2"]), L2) + f64(p["b_fc1"])
    fsc = f64(p["fcbn_gamma"]) / np.sqrt(f64(p["fcbn_var"]) + EPS)
    sf = ((b_eff - f64(p["fcbn_mean"])) * fsc + f64(p["fcbn_beta"]))[:, None]
    Wf = Wf * fsc[:, None]

    # --- FC2, rows zero-padded to a full sublane tile (8) for an unmasked store
    O_pad = max(8, ((O + 7) // 8) * 8)
    W2 = np.zeros((O_pad, H1), np.float64)
    W2[:O] = f64(p["w_fc2"])
    bo = np.zeros((O_pad, 1), np.float64)
    bo[:O, 0] = f64(p["b_fc2"])

    wcast = lambda a: jnp.asarray(a, dtype=compute_dtype)
    fcast = lambda a: jnp.asarray(a, dtype=jnp.float32)
    return (wcast(W1), fcast(s1), wcast(Wf), fcast(sf), wcast(W2), fcast(bo))


# --------------------------------- wrapper -----------------------------------
def _round_up(x, m):
    return ((x + m - 1) // m) * m


def _choose_tb(batch):
    # Core-aware tile: >=2 grid steps for v7x's two TensorCores, capped at 8192
    # (per-step working set ~ a few MiB -> fits v7x's 64 MiB VMEM / 32 MiB scoped default,
    # while v5e/v6e get the same large tile).  Always a multiple of 128 (lane width).
    tb = _round_up(max(pl.cdiv(batch, 2), 1), 128)
    return max(128, min(8192, tb))


def _pallas_forward(x2d, packed):
    """x2d: (B, L0) -> (O_pad, B) float32, batch on lanes."""
    W1, s1, Wf, sf, W2, bo = packed
    B = x2d.shape[0]
    F1, L0 = W1.shape
    H1 = Wf.shape[0]
    O_pad = W2.shape[0]

    TB = _choose_tb(B)
    grid = (pl.cdiv(B, TB),)
    x = x2d if x2d.dtype == W1.dtype else x2d.astype(W1.dtype)   # bf16 halves input DMA

    full = lambda a: pl.BlockSpec(a.shape, lambda i: (0, 0))     # VMEM-resident weights
    flops = int(2 * B * (F1 * L0 + H1 * F1 + O_pad * H1))
    bytes_accessed = int(x.dtype.itemsize * B * L0 + 4 * B * O_pad
                         + sum(int(a.size) * a.dtype.itemsize for a in packed))

    return pl.pallas_call(
        cnn2fc_kernel,
        out_shape=jax.ShapeDtypeStruct((O_pad, B), jnp.float32),
        grid=grid,
        in_specs=[
            # native (B, L0) layout, tiled over batch; partial last tile is masked by
            # Pallas (safe: batch columns are independent, padded columns are dropped).
            # If a trace shows exposed input DMA, add pipeline_mode=pl.Buffered(3) here.
            pl.BlockSpec((TB, L0), lambda i: (i, 0)),
            full(W1), full(s1), full(Wf), full(sf), full(W2), full(bo),
        ],
        out_specs=pl.BlockSpec((O_pad, TB), lambda i: (0, i)),
        compiler_params=pltpu.CompilerParams(dimension_semantics=("parallel",)),
        cost_estimate=pl.CostEstimate(flops=flops, transcendentals=0,
                                      bytes_accessed=bytes_accessed),
    )(x, W1, s1, Wf, sf, W2, bo)


def cnn2fc_forward(x2d, packed, num_outputs, *, transposed_output=False):
    """Module-faithful forward: (B, input_length) -> (B, fc_output_node_counts[-1]).

    Set transposed_output=True if the consumer accepts (O, B) directly (saves one
    small XLA transpose per call)."""
    out = _pallas_forward(x2d, packed)[:num_outputs]             # (O, B)
    return out if transposed_output else jnp.transpose(out)      # (B, O)


# --------------------------- pure-JAX reference -----------------------------
def reference_forward(x2d, p):
    hi = lax.Precision.HIGHEST
    B = x2d.shape[0]
    dn = ("NCH", "OIH", "NCH")
    x = x2d[:, None, :]                                               # unsqueeze(1)
    y = lax.conv_general_dilated(x, p["w_conv1"], (1,), "VALID",
                                 dimension_numbers=dn, precision=hi)
    y = y + p["b_conv1"][None, :, None]
    y = ((y - p["bn1_mean"][None, :, None]) / jnp.sqrt(p["bn1_var"][None, :, None] + EPS)
         * p["bn1_gamma"][None, :, None] + p["bn1_beta"][None, :, None])
    y = jnp.maximum(y, 0.0)
    y = lax.conv_general_dilated(y, p["w_conv2"], (1,), "VALID",
                                 dimension_numbers=dn, precision=hi)
    y = y + p["b_conv2"][None, :, None]
    flat = y.reshape(B, -1)                                           # PyTorch Flatten (C, L)
    z = jnp.dot(flat, p["w_fc1"].T, precision=hi) + p["b_fc1"]
    z = ((z - p["fcbn_mean"]) / jnp.sqrt(p["fcbn_var"] + EPS)
         * p["fcbn_gamma"] + p["fcbn_beta"])
    z = jnp.maximum(z, 0.0)
    return jnp.dot(z, p["w_fc2"].T, precision=hi) + p["b_fc2"]


# ----------------------------------- main ------------------------------------
if __name__ == "__main__":
    key = jax.random.PRNGKey(0)
    k_param, k_x1, k_x2 = jax.random.split(key, 3)

    p = build_params(k_param, input_length=32, cnn_out_channels=(8, 8),
                     kernel_sizes=(3, 3), fc_nodes=(16, 4))
    packed_f32 = pack_params(p, compute_dtype=jnp.float32)     # bit-faithful path
    packed_bf16 = pack_params(p, compute_dtype=jnp.bfloat16)   # default / fast path
    O = p["O"]

    # small-shape check: f32 path, single (partial) grid step, tight tolerance
    x_small = jax.random.normal(k_x1, (4, p["L0"]), jnp.float32)
    out_small = jax.block_until_ready(cnn2fc_forward(x_small, packed_f32, O))
    ref_small = jax.block_until_ready(reference_forward(x_small, p))
    assert out_small.shape == (4, O)
    assert jnp.allclose(out_small, ref_small, atol=5e-4, rtol=5e-4)

    # multi-tile check: f32 path, grid > 1 (exercises batch index_map + masked last tile)
    x_big = jax.random.normal(k_x2, (300, p["L0"]), jnp.float32)
    out_big = jax.block_until_ready(cnn2fc_forward(x_big, packed_f32, O))
    ref_big = jax.block_until_ready(reference_forward(x_big, p))
    assert out_big.shape == (300, O)
    assert jnp.allclose(out_big, ref_big, atol=5e-4, rtol=5e-4)

    # default bf16 path: tolerance gated on compute dtype (bf16 operands, f32 accumulate)
    out_bf16 = jax.block_until_ready(cnn2fc_forward(x_big, packed_bf16, O))
    err = jnp.max(jnp.abs(out_bf16 - ref_big))
    scale = jnp.max(jnp.abs(ref_big))
    assert err <= 0.05 * scale + 0.05, (err, scale)

    print("KERNEL_OK")
</pallas_src>

<mosaic_0001>
module attributes {stable_mosaic.version = 11 : i64} {
  func.func @cnn2fc_kernel(%arg0: i32, %arg1: memref<128x32xf32, #tpu.memory_space<vmem>>, %arg2: memref<240x32xf32, #tpu.memory_space<vmem>>, %arg3: memref<240x1xf32, #tpu.memory_space<vmem>>, %arg4: memref<16x240xf32, #tpu.memory_space<vmem>>, %arg5: memref<16x1xf32, #tpu.memory_space<vmem>>, %arg6: memref<8x16xf32, #tpu.memory_space<vmem>>, %arg7: memref<8x1xf32, #tpu.memory_space<vmem>>, %arg8: memref<8x128xf32, #tpu.memory_space<vmem>>) attributes {dimension_semantics = [#tpu.dimension_semantics<parallel>], iteration_bounds = array<i64: 1>, scalar_prefetch = 0 : i64, scratch_operands = 0 : i64, tpu.core_type = #tpu.core_type<tc>, window_params = [{transform_indices = @transform_0, window_bounds = array<i64: 128, 32>}, {pipeline_mode = #tpu.pipeline_mode<synchronous>, transform_indices = @transform_1, window_bounds = array<i64: 240, 32>}, {pipeline_mode = #tpu.pipeline_mode<synchronous>, transform_indices = @transform_2, window_bounds = array<i64: 240, 1>}, {pipeline_mode = #tpu.pipeline_mode<synchronous>, transform_indices = @transform_3, window_bounds = array<i64: 16, 240>}, {pipeline_mode = #tpu.pipeline_mode<synchronous>, transform_indices = @transform_4, window_bounds = array<i64: 16, 1>}, {pipeline_mode = #tpu.pipeline_mode<synchronous>, transform_indices = @transform_5, window_bounds = array<i64: 8, 16>}, {pipeline_mode = #tpu.pipeline_mode<synchronous>, transform_indices = @transform_6, window_bounds = array<i64: 8, 1>}, {transform_indices = @transform_7, window_bounds = array<i64: 8, 128>}]} {
    %c0 = arith.constant 0 : index
    %c0_0 = arith.constant 0 : index
    %0 = vector.load %arg1[%c0, %c0_0] : memref<128x32xf32, #tpu.memory_space<vmem>>, vector<128x32xf32>
    %c0_1 = arith.constant 0 : index
    %c0_2 = arith.constant 0 : index
    %1 = vector.load %arg2[%c0_1, %c0_2] : memref<240x32xf32, #tpu.memory_space<vmem>>, vector<240x32xf32>
    %cst = arith.constant dense<0.000000e+00> : vector<240x128xf32>
    %2 = tpu.matmul %1, %0, %cst {dimension_numbers = #tpu.dot_dimension_numbers<[1], [1], [0], [0], [0, 0, 1, 0], [], []>} : vector<240x32xf32>, vector<128x32xf32>, vector<240x128xf32> -> vector<240x128xf32>
    %c0_3 = arith.constant 0 : index
    %c0_4 = arith.constant 0 : index
    %3 = vector.load %arg3[%c0_3, %c0_4] : memref<240x1xf32, #tpu.memory_space<vmem>>, vector<240x1xf32>
    %4 = vector.broadcast %3 : vector<240x1xf32> to vector<240x128xf32>
    %5 = arith.addf %2, %4 : vector<240x128xf32>
    %cst_5 = arith.constant 0.000000e+00 : f32
    %6 = vector.broadcast %cst_5 : f32 to vector<240x128xf32>
    %7 = arith.maximumf %5, %6 : vector<240x128xf32>
    %c0_6 = arith.constant 0 : index
    %c0_7 = arith.constant 0 : index
    %8 = vector.load %arg4[%c0_6, %c0_7] : memref<16x240xf32, #tpu.memory_space<vmem>>, vector<16x240xf32>
    %cst_8 = arith.constant dense<0.000000e+00> : vector<16x128xf32>
    %9 = tpu.matmul %8, %7, %cst_8 {dimension_numbers = #tpu.dot_dimension_numbers<[1], [0], [0], [1], [0, 0, 1, 1], [], []>} : vector<16x240xf32>, vector<240x128xf32>, vector<16x128xf32> -> vector<16x128xf32>
    %c0_9 = arith.constant 0 : index
    %c0_10 = arith.constant 0 : index
    %10 = vector.load %arg5[%c0_9, %c0_10] : memref<16x1xf32, #tpu.memory_space<vmem>>, vector<16x1xf32>
    %11 = vector.broadcast %10 : vector<16x1xf32> to vector<16x128xf32>
    %12 = arith.addf %9, %11 : vector<16x128xf32>
    %cst_11 = arith.constant 0.000000e+00 : f32
    %13 = vector.broadcast %cst_11 : f32 to vector<16x128xf32>
    %14 = arith.maximumf %12, %13 : vector<16x128xf32>
    %c0_12 = arith.constant 0 : index
    %c0_13 = arith.constant 0 : index
    %15 = vector.load %arg6[%c0_12, %c0_13] : memref<8x16xf32, #tpu.memory_space<vmem>>, vector<8x16xf32>
    %cst_14 = arith.constant dense<0.000000e+00> : vector<8x128xf32>
    %16 = tpu.matmul %15, %14, %cst_14 {dimension_numbers = #tpu.dot_dimension_numbers<[1], [0], [0], [1], [0, 0, 1, 1], [], []>} : vector<8x16xf32>, vector<16x128xf32>, vector<8x128xf32> -> vector<8x128xf32>
    %c0_15 = arith.constant 0 : index
    %c0_16 = arith.constant 0 : index
    %17 = vector.load %arg7[%c0_15, %c0_16] : memref<8x1xf32, #tpu.memory_space<vmem>>, vector<8x1xf32>
    %18 = vector.broadcast %17 : vector<8x1xf32> to vector<8x128xf32>
    %19 = arith.addf %16, %18 : vector<8x128xf32>
    %c0_17 = arith.constant 0 : index
    %c0_18 = arith.constant 0 : index
    %20 = vector.load %arg8[%c0_17, %c0_18] : memref<8x128xf32, #tpu.memory_space<vmem>>, vector<8x128xf32>
    tpu.vector_store %arg8[%c0_17, %c0_18], %19 {strides = array<i32>} : memref<8x128xf32, #tpu.memory_space<vmem>>, vector<8x128xf32>,
    return
  }
  func.func @transform_0(%arg0: i32) -> (i32, i32) {
    %c0_i32 = arith.constant 0 : i32
    %c0_i32_0 = arith.constant 0 : i32
    return %arg0, %c0_i32 : i32, i32
  }
  func.func @transform_1(%arg0: i32) -> (i32, i32) {
    %c0_i32 = arith.constant 0 : i32
    %c0_i32_0 = arith.constant 0 : i32
    %c0_i32_1 = arith.constant 0 : i32
    return %c0_i32, %c0_i32_0 : i32, i32
  }
  func.func @transform_2(%arg0: i32) -> (i32, i32) {
    %c0_i32 = arith.constant 0 : i32
    %c0_i32_0 = arith.constant 0 : i32
    %c0_i32_1 = arith.constant 0 : i32
    return %c0_i32, %c0_i32_0 : i32, i32
  }
  func.func @transform_3(%arg0: i32) -> (i32, i32) {
    %c0_i32 = arith.constant 0 : i32
    %c0_i32_0 = arith.constant 0 : i32
    %c0_i32_1 = arith.constant 0 : i32
    return %c0_i32, %c0_i32_0 : i32, i32
  }
  func.func @transform_4(%arg0: i32) -> (i32, i32) {
    %c0_i32 = arith.constant 0 : i32
    %c0_i32_0 = arith.constant 0 : i32
    %c0_i32_1 = arith.constant 0 : i32
    return %c0_i32, %c0_i32_0 : i32, i32
  }
  func.func @transform_5(%arg0: i32) -> (i32, i32) {
    %c0_i32 = arith.constant 0 : i32
    %c0_i32_0 = arith.constant 0 : i32
    %c0_i32_1 = arith.constant 0 : i32
    return %c0_i32, %c0_i32_0 : i32, i32
  }
  func.func @transform_6(%arg0: i32) -> (i32, i32) {
    %c0_i32 = arith.constant 0 : i32
    %c0_i32_0 = arith.constant 0 : i32
    %c0_i32_1 = arith.constant 0 : i32
    return %c0_i32, %c0_i32_0 : i32, i32
  }
  func.func @transform_7(%arg0: i32) -> (i32, i32) {
    %c0_i32 = arith.constant 0 : i32
    %c0_i32_0 = arith.constant 0 : i32
    return %c0_i32, %arg0 : i32, i32
  }
}

</mosaic_0001>

<llo_original>
// kernel: tpu_custom_call.1
$region0: #{tpu_custom_call.1}
  #allocation0 [shape = 'u32[]', space=smem, size = 0x4, offset = 0x4, fixed_abs, tag = 'smem constant byte address 0x4 - core index']
  #allocation1 [shape = 'u32[144,128]{1,0:T(1,128)}', space=vmem, size = 0x12000, scoped, tag = 'internal scratch']
  %s0 = inlined_call_operand.vmem [shape: f32[4,32], index: 0, kind: input, shape index: {}]
  %s1 = inlined_call_operand.vmem [shape: f32[240,32], index: 1, kind: input, shape index: {}]
  %s2 = inlined_call_operand.vmem [shape: f32[240,1], index: 2, kind: input, shape index: {}]
  %s3 = inlined_call_operand.vmem [shape: f32[16,240], index: 3, kind: input, shape index: {}]
  %s4 = inlined_call_operand.vmem [shape: f32[16,1], index: 4, kind: input, shape index: {}]
  %s5 = inlined_call_operand.vmem [shape: f32[8,16], index: 5, kind: input, shape index: {}]
  %s6 = inlined_call_operand.vmem [shape: f32[8,1], index: 6, kind: input, shape index: {}]
  %s7 = inlined_call_operand.vmem [shape: f32[8,4], index: 7, kind: output, shape index: {}]
  %s8 = sld [smem:[#allocation0]]
  $region38: #{tpu_custom_call.1} parent=0
    _
  %s10 = ssub.s32 1, %s8
  %s11 = scalar_select 0, %s10, %s8
  // Predicated region
  $region2: #{tpu_custom_call.1} parent=0 // pred_check
    _
  $region3: #{tpu_custom_call.1} parent=0 // pred_check_branch
    %13 = sbr.rel (0) target = $region5
  $region4: #{tpu_custom_call.1} parent=0 // pred_region
    _
  $region5: #{tpu_custom_call.1} parent=0 // pred_fallthru
    _
  // Predicated region
  $region6: #{tpu_custom_call.1} parent=0 // pred_check
    _
  $region7: #{tpu_custom_call.1} parent=0 // pred_check_branch
    %15 = sbr.rel (0) target = $region9
  $region8: #{tpu_custom_call.1} parent=0 // pred_region
    _
  $region9: #{tpu_custom_call.1} parent=0 // pred_fallthru
    _
  // Predicated region
  $region10: #{tpu_custom_call.1} parent=0 // pred_check
    _
  $region11: #{tpu_custom_call.1} parent=0 // pred_check_branch
    %17 = sbr.rel (0) target = $region13
  $region12: #{tpu_custom_call.1} parent=0 // pred_region
    _
  $region13: #{tpu_custom_call.1} parent=0 // pred_fallthru
    _
  // Predicated region
  $region14: #{tpu_custom_call.1} parent=0 // pred_check
    _
  $region15: #{tpu_custom_call.1} parent=0 // pred_check_branch
    %19 = sbr.rel (0) target = $region17
  $region16: #{tpu_custom_call.1} parent=0 // pred_region
    _
  $region17: #{tpu_custom_call.1} parent=0 // pred_fallthru
    _
  // Predicated region
  $region18: #{tpu_custom_call.1} parent=0 // pred_check
    _
  $region19: #{tpu_custom_call.1} parent=0 // pred_check_branch
    %21 = sbr.rel (0) target = $region21
  $region20: #{tpu_custom_call.1} parent=0 // pred_region
    _
  $region21: #{tpu_custom_call.1} parent=0 // pred_fallthru
    _
  // Predicated region
  $region22: #{tpu_custom_call.1} parent=0 // pred_check
    _
  $region23: #{tpu_custom_call.1} parent=0 // pred_check_branch
    %23 = sbr.rel (0) target = $region25
  $region24: #{tpu_custom_call.1} parent=0 // pred_region
    _
  $region25: #{tpu_custom_call.1} parent=0 // pred_fallthru
    _
  // Predicated region
  $region26: #{tpu_custom_call.1} parent=0 // pred_check
    _
  $region27: #{tpu_custom_call.1} parent=0 // pred_check_branch
    %25 = sbr.rel (0) target = $region29
  $region28: #{tpu_custom_call.1} parent=0 // pred_region
    _
  $region29: #{tpu_custom_call.1} parent=0 // pred_fallthru
    _
  %v26 = vld [vmem:[%s0] sm:$0xff]
  %v27 = vld [vmem:[%s0 + $0x8] sm:$0xff]
  %v28 = vld [vmem:[%s0 + $0x10] sm:$0xff]
  %v29 = vld [vmem:[%s0 + $0x18] sm:$0xff]
  %v30 = vld [vmem:[%s0 + $0x20] sm:$0xff]
  %v31 = vld [vmem:[%s0 + $0x28] sm:$0xff]
  %v32 = vld [vmem:[%s0 + $0x30] sm:$0xff]
  %v33 = vld [vmem:[%s0 + $0x38] sm:$0xff]
  %v34 = vld [vmem:[%s0 + $0x40] sm:$0xff]
  %v35 = vld [vmem:[%s0 + $0x48] sm:$0xff]
  %v36 = vld [vmem:[%s0 + $0x50] sm:$0xff]
  %v37 = vld [vmem:[%s0 + $0x58] sm:$0xff]
  %v38 = vld [vmem:[%s0 + $0x60] sm:$0xff]
  %v39 = vld [vmem:[%s0 + $0x68] sm:$0xff]
  %v40 = vld [vmem:[%s0 + $0x70] sm:$0xff]
  %v41 = vld [vmem:[%s0 + $0x78] sm:$0xff]
  %v42 = vld [vmem:[%s1] sm:$0xff]
  %v43 = vld [vmem:[%s1 + $0x8] sm:$0xff]
  %v44 = vld [vmem:[%s1 + $0x10] sm:$0xff]
  %v45 = vld [vmem:[%s1 + $0x18] sm:$0xff]
  %v46 = vld [vmem:[%s1 + $0x20] sm:$0xff]
  %v47 = vld [vmem:[%s1 + $0x28] sm:$0xff]
  %v48 = vld [vmem:[%s1 + $0x30] sm:$0xff]
  %v49 = vld [vmem:[%s1 + $0x38] sm:$0xff]
  %v50 = vld [vmem:[%s1 + $0x40] sm:$0xff]
  %v51 = vld [vmem:[%s1 + $0x48] sm:$0xff]
  %v52 = vld [vmem:[%s1 + $0x50] sm:$0xff]
  %v53 = vld [vmem:[%s1 + $0x58] sm:$0xff]
  %v54 = vld [vmem:[%s1 + $0x60] sm:$0xff]
  %v55 = vld [vmem:[%s1 + $0x68] sm:$0xff]
  %v56 = vld [vmem:[%s1 + $0x70] sm:$0xff]
  %v57 = vld [vmem:[%s1 + $0x78] sm:$0xff]
  %v58 = vld [vmem:[%s1 + $0x80] sm:$0xff]
  %v59 = vld [vmem:[%s1 + $0x88] sm:$0xff]
  %v60 = vld [vmem:[%s1 + $0x90] sm:$0xff]
  %v61 = vld [vmem:[%s1 + $0x98] sm:$0xff]
  %v62 = vld [vmem:[%s1 + $0xa0] sm:$0xff]
  %v63 = vld [vmem:[%s1 + $0xa8] sm:$0xff]
  %v64 = vld [vmem:[%s1 + $0xb0] sm:$0xff]
  %v65 = vld [vmem:[%s1 + $0xb8] sm:$0xff]
  %v66 = vld [vmem:[%s1 + $0xc0] sm:$0xff]
  %v67 = vld [vmem:[%s1 + $0xc8] sm:$0xff]
  %v68 = vld [vmem:[%s1 + $0xd0] sm:$0xff]
  %v69 = vld [vmem:[%s1 + $0xd8] sm:$0xff]
  %v70 = vld [vmem:[%s1 + $0xe0] sm:$0xff]
  %v71 = vld [vmem:[%s1 + $0xe8] sm:$0xff]
  %v72 = vld [vmem:[%s2] sm:$0xff]
  %v73 = vld [vmem:[%s2 + $0x8] sm:$0xff]
  %v74 = vld [vmem:[%s2 + $0x10] sm:$0xff]
  %v75 = vld [vmem:[%s2 + $0x18] sm:$0xff]
  %v76 = vld [vmem:[%s2 + $0x20] sm:$0xff]
  %v77 = vld [vmem:[%s2 + $0x28] sm:$0xff]
  %v78 = vld [vmem:[%s2 + $0x30] sm:$0xff]
  %v79 = vld [vmem:[%s2 + $0x38] sm:$0xff]
  %v80 = vld [vmem:[%s2 + $0x40] sm:$0xff]
  %v81 = vld [vmem:[%s2 + $0x48] sm:$0xff]
  %v82 = vld [vmem:[%s2 + $0x50] sm:$0xff]
  %v83 = vld [vmem:[%s2 + $0x58] sm:$0xff]
  %v84 = vld [vmem:[%s2 + $0x60] sm:$0xff]
  %v85 = vld [vmem:[%s2 + $0x68] sm:$0xff]
  %v86 = vld [vmem:[%s2 + $0x70] sm:$0xff]
  %v87 = vld [vmem:[%s2 + $0x78] sm:$0xff]
  %v88 = vld [vmem:[%s2 + $0x80] sm:$0xff]
  %v89 = vld [vmem:[%s2 + $0x88] sm:$0xff]
  %v90 = vld [vmem:[%s2 + $0x90] sm:$0xff]
  %v91 = vld [vmem:[%s2 + $0x98] sm:$0xff]
  %v92 = vld [vmem:[%s2 + $0xa0] sm:$0xff]
  %v93 = vld [vmem:[%s2 + $0xa8] sm:$0xff]
  %v94 = vld [vmem:[%s2 + $0xb0] sm:$0xff]
  %v95 = vld [vmem:[%s2 + $0xb8] sm:$0xff]
  %v96 = vld [vmem:[%s2 + $0xc0] sm:$0xff]
  %v97 = vld [vmem:[%s2 + $0xc8] sm:$0xff]
  %v98 = vld [vmem:[%s2 + $0xd0] sm:$0xff]
  %v99 = vld [vmem:[%s2 + $0xd8] sm:$0xff]
  %v100 = vld [vmem:[%s2 + $0xe0] sm:$0xff]
  %v101 = vld [vmem:[%s2 + $0xe8] sm:$0xff]
  %103 = vset.pattern.permute.xlu0 0
  %104 = vperm.xlu0 %103, %v72
  %v105 = vpop.permute.xlu0 %104
  %108 = vset.pattern.permute.xlu0 0
  %109 = vperm.xlu0 %108, %v73
  %v110 = vpop.permute.xlu0 %109
  %113 = vset.pattern.permute.xlu0 0
  %114 = vperm.xlu0 %113, %v74
  %v115 = vpop.permute.xlu0 %114
  %118 = vset.pattern.permute.xlu0 0
  %119 = vperm.xlu0 %118, %v75
  %v120 = vpop.permute.xlu0 %119
  %123 = vset.pattern.permute.xlu0 0
  %124 = vperm.xlu0 %123, %v76
  %v125 = vpop.permute.xlu0 %124
  %128 = vset.pattern.permute.xlu0 0
  %129 = vperm.xlu0 %128, %v77
  %v130 = vpop.permute.xlu0 %129
  %133 = vset.pattern.permute.xlu0 0
  %134 = vperm.xlu0 %133, %v78
  %v135 = vpop.permute.xlu0 %134
  %138 = vset.pattern.permute.xlu0 0
  %139 = vperm.xlu0 %138, %v79
  %v140 = vpop.permute.xlu0 %139
  %143 = vset.pattern.permute.xlu0 0
  %144 = vperm.xlu0 %143, %v80
  %v145 = vpop.permute.xlu0 %144
  %148 = vset.pattern.permute.xlu0 0
  %149 = vperm.xlu0 %148, %v81
  %v150 = vpop.permute.xlu0 %149
  %153 = vset.pattern.permute.xlu0 0
  %154 = vperm.xlu0 %153, %v82
  %v155 = vpop.permute.xlu0 %154
  %158 = vset.pattern.permute.xlu0 0
  %159 = vperm.xlu0 %158, %v83
  %v160 = vpop.permute.xlu0 %159
  %163 = vset.pattern.permute.xlu0 0
  %164 = vperm.xlu0 %163, %v84
  %v165 = vpop.permute.xlu0 %164
  %168 = vset.pattern.permute.xlu0 0
  %169 = vperm.xlu0 %168, %v85
  %v170 = vpop.permute.xlu0 %169
  %173 = vset.pattern.permute.xlu0 0
  %174 = vperm.xlu0 %173, %v86
  %v175 = vpop.permute.xlu0 %174
  %178 = vset.pattern.permute.xlu0 0
  %179 = vperm.xlu0 %178, %v87
  %v180 = vpop.permute.xlu0 %179
  %183 = vset.pattern.permute.xlu0 0
  %184 = vperm.xlu0 %183, %v88
  %v185 = vpop.permute.xlu0 %184
  %188 = vset.pattern.permute.xlu0 0
  %189 = vperm.xlu0 %188, %v89
  %v190 = vpop.permute.xlu0 %189
  %193 = vset.pattern.permute.xlu0 0
  %194 = vperm.xlu0 %193, %v90
  %v195 = vpop.permute.xlu0 %194
  %198 = vset.pattern.permute.xlu0 0
  %199 = vperm.xlu0 %198, %v91
  %v200 = vpop.permute.xlu0 %199
  %203 = vset.pattern.permute.xlu0 0
  %204 = vperm.xlu0 %203, %v92
  %v205 = vpop.permute.xlu0 %204
  %208 = vset.pattern.permute.xlu0 0
  %209 = vperm.xlu0 %208, %v93
  %v210 = vpop.permute.xlu0 %209
  %213 = vset.pattern.permute.xlu0 0
  %214 = vperm.xlu0 %213, %v94
  %v215 = vpop.permute.xlu0 %214
  %218 = vset.pattern.permute.xlu0 0
  %219 = vperm.xlu0 %218, %v95
  %v220 = vpop.permute.xlu0 %219
  %223 = vset.pattern.permute.xlu0 0
  %224 = vperm.xlu0 %223, %v96
  %v225 = vpop.permute.xlu0 %224
  %228 = vset.pattern.permute.xlu0 0
  %229 = vperm.xlu0 %228, %v97
  %v230 = vpop.permute.xlu0 %229
  %233 = vset.pattern.permute.xlu0 0
  %234 = vperm.xlu0 %233, %v98
  %v235 = vpop.permute.xlu0 %234
  %238 = vset.pattern.permute.xlu0 0
  %239 = vperm.xlu0 %238, %v99
  %v240 = vpop.permute.xlu0 %239
  %243 = vset.pattern.permute.xlu0 0
  %244 = vperm.xlu0 %243, %v100
  %v245 = vpop.permute.xlu0 %244
  %248 = vset.pattern.permute.xlu0 0
  %249 = vperm.xlu0 %248, %v101
  %v250 = vpop.permute.xlu0 %249
  %vm252 = vcmask 261120
  %v254 = vsel %vm252, %v42, 0
  %v257 = vsel %vm252, %v43, 0
  %v260 = vsel %vm252, %v44, 0
  %v263 = vsel %vm252, %v45, 0
  %v266 = vsel %vm252, %v46, 0
  %v269 = vsel %vm252, %v47, 0
  %v272 = vsel %vm252, %v48, 0
  %v275 = vsel %vm252, %v49, 0
  %v278 = vsel %vm252, %v50, 0
  %v281 = vsel %vm252, %v51, 0
  %v284 = vsel %vm252, %v52, 0
  %v287 = vsel %vm252, %v53, 0
  %v290 = vsel %vm252, %v54, 0
  %v293 = vsel %vm252, %v55, 0
  %v296 = vsel %vm252, %v56, 0
  %v299 = vsel %vm252, %v57, 0
  %v302 = vsel %vm252, %v58, 0
  %v305 = vsel %vm252, %v59, 0
  %v308 = vsel %vm252, %v60, 0
  %v311 = vsel %vm252, %v61, 0
  %v314 = vsel %vm252, %v62, 0
  %v317 = vsel %vm252, %v63, 0
  %v320 = vsel %vm252, %v64, 0
  %v323 = vsel %vm252, %v65, 0
  %v326 = vsel %vm252, %v66, 0
  %v329 = vsel %vm252, %v67, 0
  %v332 = vsel %vm252, %v68, 0
  %v335 = vsel %vm252, %v69, 0
  %v338 = vsel %vm252, %v70, 0
  %v341 = vsel %vm252, %v71, 0
  %v344 = vsel %vm252, %v26, 0
  %v347 = vsel %vm252, %v27, 0
  %v350 = vsel %vm252, %v28, 0
  %v353 = vsel %vm252, %v29, 0
  %v356 = vsel %vm252, %v30, 0
  %v359 = vsel %vm252, %v31, 0
  %v362 = vsel %vm252, %v32, 0
  %v365 = vsel %vm252, %v33, 0
  %v368 = vsel %vm252, %v34, 0
  %v371 = vsel %vm252, %v35, 0
  %v374 = vsel %vm252, %v36, 0
  %v377 = vsel %vm252, %v37, 0
  %v380 = vsel %vm252, %v38, 0
  %v383 = vsel %vm252, %v39, 0
  %v386 = vsel %vm252, %v40, 0
  %v389 = vsel %vm252, %v41, 0
  %391 = vmatprep.subr.mxu0 0.0
  %392 = vmatpush1.xpose.msra.mxu0 %v344
  %393 = vmatprep.subr.mxu0 0.0
  %394 = vmatpush1.xpose.msra.mxu0 %v347
  %395 = vmatprep.subr.mxu0 0.0
  %396 = vmatpush1.xpose.msra.mxu0 %v350
  %397 = vmatprep.subr.mxu0 0.0
  %398 = vmatpush1.xpose.msra.mxu0 %v353
  %399 = vmatprep.subr.mxu0 0.0
  %400 = vmatpush1.xpose.msra.mxu0 %v356
  %401 = vmatprep.subr.mxu0 0.0
  %402 = vmatpush1.xpose.msra.mxu0 %v359
  %403 = vmatprep.subr.mxu0 0.0
  %404 = vmatpush1.xpose.msra.mxu0 %v362
  %405 = vmatprep.subr.mxu0 0.0
  %406 = vmatpush1.xpose.msra.mxu0 %v365
  %407 = vmatprep.subr.mxu0 0.0
  %408 = vmatpush1.xpose.msra.mxu0 %v368
  %409 = vmatprep.subr.mxu0 0.0
  %410 = vmatpush1.xpose.msra.mxu0 %v371
  %411 = vmatprep.subr.mxu0 0.0
  %412 = vmatpush1.xpose.msra.mxu0 %v374
  %413 = vmatprep.subr.mxu0 0.0
  %414 = vmatpush1.xpose.msra.mxu0 %v377
  %415 = vmatprep.subr.mxu0 0.0
  %416 = vmatpush1.xpose.msra.mxu0 %v380
  %417 = vmatprep.subr.mxu0 0.0
  %418 = vmatpush1.xpose.msra.mxu0 %v383
  %419 = vmatprep.subr.mxu0 0.0
  %420 = vmatpush1.xpose.msra.mxu0 %v386
  %421 = vmatprep.subr.mxu0 0.0
  %422 = vmatpush1.xpose.msra.mxu0 %v389
  %423 = vmatprep.subr.mxu0 0.0
  %424 = vmatpush1.xpose.msra.mxu0 0.0
  %425 = vmatprep.subr.mxu0 0.0
  %426 = vmatpush1.xpose.msra.mxu0 0.0
  %427 = vmatprep.subr.mxu0 0.0
  %428 = vmatpush1.xpose.msra.mxu0 0.0
  %429 = vmatprep.subr.mxu0 0.0
  %430 = vmatpush1.xpose.msra.mxu0 0.0
  %431 = vmatprep.subr.mxu0 0.0
  %432 = vmatpush1.xpose.msra.mxu0 0.0
  %433 = vmatprep.subr.mxu0 0.0
  %434 = vmatpush1.xpose.msra.mxu0 0.0
  %435 = vmatprep.subr.mxu0 0.0
  %436 = vmatpush1.xpose.msra.mxu0 0.0
  %437 = vmatprep.subr.mxu0 0.0
  %438 = vmatpush1.xpose.msra.mxu0 0.0
  %439 = vmatprep.subr.mxu0 0.0
  %440 = vmatpush1.xpose.msra.mxu0 0.0
  %441 = vmatprep.subr.mxu0 0.0
  %442 = vmatpush1.xpose.msra.mxu0 0.0
  %443 = vmatprep.subr.mxu0 0.0
  %444 = vmatpush1.xpose.msra.mxu0 0.0
  %445 = vmatprep.subr.mxu0 0.0
  %446 = vmatpush1.xpose.msra.mxu0 0.0
  %447 = vmatprep.subr.mxu0 0.0
  %448 = vmatpush1.xpose.msra.mxu0 0.0
  %449 = vmatprep.subr.mxu0 0.0
  %450 = vmatpush1.xpose.msra.mxu0 0.0
  %451 = vmatprep.subr.mxu0 0.0
  %452 = vmatpush1.xpose.msra.mxu0 0.0
  %453 = vmatprep.subr.mxu0 0.0
  %454 = vmatpush1.xpose.msra.mxu0 0.0
  %455 = vmatprep.mubr.f32.mxu0 0.0
  %456 = vmatmul.mubr.f32.gmra.mrb[0].mxu0 %v254
  %v457 = vpop.f32.mrb[0].mxu0
  %v458 = vadd.f32 %v105, %v457
  %v459 = vpop.f32.mrb[0].mxu0
  %460 = vmatprep.mubr.f32.mxu0 0.0
  %461 = vmatmul.mubr.f32.gmra.mrb[0].mxu0 %v257
  %v462 = vpop.f32.mrb[0].mxu0
  %v463 = vadd.f32 %v110, %v462
  %v464 = vpop.f32.mrb[0].mxu0
  %465 = vmatprep.mubr.f32.mxu0 0.0
  %466 = vmatmul.mubr.f32.gmra.mrb[0].mxu0 %v260
  %v467 = vpop.f32.mrb[0].mxu0
  %v468 = vadd.f32 %v115, %v467
  %v469 = vpop.f32.mrb[0].mxu0
  %470 = vmatprep.mubr.f32.mxu0 0.0
  %471 = vmatmul.mubr.f32.gmra.mrb[0].mxu0 %v263
  %v472 = vpop.f32.mrb[0].mxu0
  %v473 = vadd.f32 %v120, %v472
  %v474 = vpop.f32.mrb[0].mxu0
  %475 = vmatprep.mubr.f32.mxu0 0.0
  %476 = vmatmul.mubr.f32.gmra.mrb[0].mxu0 %v266
  %v477 = vpop.f32.mrb[0].mxu0
  %v478 = vadd.f32 %v125, %v477
  %v479 = vpop.f32.mrb[0].mxu0
  %480 = vmatprep.mubr.f32.mxu0 0.0
  %481 = vmatmul.mubr.f32.gmra.mrb[0].mxu0 %v269
  %v482 = vpop.f32.mrb[0].mxu0
  %v483 = vadd.f32 %v130, %v482
  %v484 = vpop.f32.mrb[0].mxu0
  %485 = vmatprep.mubr.f32.mxu0 0.0
  %486 = vmatmul.mubr.f32.gmra.mrb[0].mxu0 %v272
  %v487 = vpop.f32.mrb[0].mxu0
  %v488 = vadd.f32 %v135, %v487
  %v489 = vpop.f32.mrb[0].mxu0
  %490 = vmatprep.mubr.f32.mxu0 0.0
  %491 = vmatmul.mubr.f32.gmra.mrb[0].mxu0 %v275
  %v492 = vpop.f32.mrb[0].mxu0
  %v493 = vadd.f32 %v140, %v492
  %v494 = vpop.f32.mrb[0].mxu0
  %495 = vmatprep.mubr.f32.mxu0 0.0
  %496 = vmatmul.mubr.f32.gmra.mrb[0].mxu0 %v278
  %v497 = vpop.f32.mrb[0].mxu0
  %v498 = vadd.f32 %v145, %v497
  %v499 = vpop.f32.mrb[0].mxu0
  %500 = vmatprep.mubr.f32.mxu0 0.0
  %501 = vmatmul.mubr.f32.gmra.mrb[0].mxu0 %v281
  %v502 = vpop.f32.mrb[0].mxu0
  %v503 = vadd.f32 %v150, %v502
  %v504 = vpop.f32.mrb[0].mxu0
  %505 = vmatprep.mubr.f32.mxu0 0.0
  %506 = vmatmul.mubr.f32.gmra.mrb[0].mxu0 %v284
  %v507 = vpop.f32.mrb[0].mxu0
  %v508 = vadd.f32 %v155, %v507
  %v509 = vpop.f32.mrb[0].mxu0
  %510 = vmatprep.mubr.f32.mxu0 0.0
  %511 = vmatmul.mubr.f32.gmra.mrb[0].mxu0 %v287
  %v512 = vpop.f32.mrb[0].mxu0
  %v513 = vadd.f32 %v160, %v512
  %v514 = vpop.f32.mrb[0].mxu0
  %515 = vmatprep.mubr.f32.mxu0 0.0
  %516 = vmatmul.mubr.f32.gmra.mrb[0].mxu0 %v290
  %v517 = vpop.f32.mrb[0].mxu0
  %v518 = vadd.f32 %v165, %v517
  %v519 = vpop.f32.mrb[0].mxu0
  %520 = vmatprep.mubr.f32.mxu0 0.0
  %521 = vmatmul.mubr.f32.gmra.mrb[0].mxu0 %v293
  %v522 = vpop.f32.mrb[0].mxu0
  %v523 = vadd.f32 %v170, %v522
  %v524 = vpop.f32.mrb[0].mxu0
  %525 = vmatprep.mubr.f32.mxu0 0.0
  %526 = vmatmul.mubr.f32.gmra.mrb[0].mxu0 %v296
  %v527 = vpop.f32.mrb[0].mxu0
  %v528 = vadd.f32 %v175, %v527
  %v529 = vpop.f32.mrb[0].mxu0
  %530 = vmatprep.mubr.f32.mxu0 0.0
  %531 = vmatmul.mubr.f32.gmra.mrb[0].mxu0 %v299
  %v532 = vpop.f32.mrb[0].mxu0
  %v533 = vadd.f32 %v180, %v532
  %v534 = vpop.f32.mrb[0].mxu0
  %535 = vmatprep.mubr.f32.mxu0 0.0
  %536 = vmatmul.mubr.f32.gmra.mrb[0].mxu0 %v302
  %v537 = vpop.f32.mrb[0].mxu0
  %v538 = vadd.f32 %v185, %v537
  %v539 = vpop.f32.mrb[0].mxu0
  %540 = vmatprep.mubr.f32.mxu0 0.0
  %541 = vmatmul.mubr.f32.gmra.mrb[0].mxu0 %v305
  %v542 = vpop.f32.mrb[0].mxu0
  %v543 = vadd.f32 %v190, %v542
  %v544 = vpop.f32.mrb[0].mxu0
  %545 = vmatprep.mubr.f32.mxu0 0.0
  %546 = vmatmul.mubr.f32.gmra.mrb[0].mxu0 %v308
  %v547 = vpop.f32.mrb[0].mxu0
  %v548 = vadd.f32 %v195, %v547
  %v549 = vpop.f32.mrb[0].mxu0
  %550 = vmatprep.mubr.f32.mxu0 0.0
  %551 = vmatmul.mubr.f32.gmra.mrb[0].mxu0 %v311
  %v552 = vpop.f32.mrb[0].mxu0
  %v553 = vadd.f32 %v200, %v552
  %v554 = vpop.f32.mrb[0].mxu0
  %555 = vmatprep.mubr.f32.mxu0 0.0
  %556 = vmatmul.mubr.f32.gmra.mrb[0].mxu0 %v314
  %v557 = vpop.f32.mrb[0].mxu0
  %v558 = vadd.f32 %v205, %v557
  %v559 = vpop.f32.mrb[0].mxu0
  %560 = vmatprep.mubr.f32.mxu0 0.0
  %561 = vmatmul.mubr.f32.gmra.mrb[0].mxu0 %v317
  %v562 = vpop.f32.mrb[0].mxu0
  %v563 = vadd.f32 %v210, %v562
  %v564 = vpop.f32.mrb[0].mxu0
  %565 = vmatprep.mubr.f32.mxu0 0.0
  %566 = vmatmul.mubr.f32.gmra.mrb[0].mxu0 %v320
  %v567 = vpop.f32.mrb[0].mxu0
  %v568 = vadd.f32 %v215, %v567
  %v569 = vpop.f32.mrb[0].mxu0
  %570 = vmatprep.mubr.f32.mxu0 0.0
  %571 = vmatmul.mubr.f32.gmra.mrb[0].mxu0 %v323
  %v572 = vpop.f32.mrb[0].mxu0
  %v573 = vadd.f32 %v220, %v572
  %v574 = vpop.f32.mrb[0].mxu0
  %575 = vmatprep.mubr.f32.mxu0 0.0
  %576 = vmatmul.mubr.f32.gmra.mrb[0].mxu0 %v326
  %v577 = vpop.f32.mrb[0].mxu0
  %v578 = vadd.f32 %v225, %v577
  %v579 = vpop.f32.mrb[0].mxu0
  %580 = vmatprep.mubr.f32.mxu0 0.0
  %581 = vmatmul.mubr.f32.gmra.mrb[0].mxu0 %v329
  %v582 = vpop.f32.mrb[0].mxu0
  %v583 = vadd.f32 %v230, %v582
  %v584 = vpop.f32.mrb[0].mxu0
  %585 = vmatprep.mubr.f32.mxu0 0.0
  %586 = vmatmul.mubr.f32.gmra.mrb[0].mxu0 %v332
  %v587 = vpop.f32.mrb[0].mxu0
  %v588 = vadd.f32 %v235, %v587
  %v589 = vpop.f32.mrb[0].mxu0
  %590 = vmatprep.mubr.f32.mxu0 0.0
  %591 = vmatmul.mubr.f32.gmra.mrb[0].mxu0 %v335
  %v592 = vpop.f32.mrb[0].mxu0
  %v593 = vadd.f32 %v240, %v592
  %v594 = vpop.f32.mrb[0].mxu0
  %595 = vmatprep.mubr.f32.mxu0 0.0
  %596 = vmatmul.mubr.f32.gmra.mrb[0].mxu0 %v338
  %v597 = vpop.f32.mrb[0].mxu0
  %v598 = vadd.f32 %v245, %v597
  %v599 = vpop.f32.mrb[0].mxu0
  %600 = vmatprep.mubr.f32.mxu0 0.0
  %601 = vmatmul.mubr.f32.gmra.mrb[0].mxu0 %v341
  %v602 = vpop.f32.mrb[0].mxu0
  %v603 = vadd.f32 %v250, %v602
  %v604 = vpop.f32.mrb[0].mxu0
  %605 = vdwg.mxu0
  %v606 = vmax.f32 %v458, 0.0
  %v607 = vmax.f32 %v463, 0.0
  %v608 = vmax.f32 %v468, 0.0
  %v609 = vmax.f32 %v473, 0.0
  %v610 = vmax.f32 %v478, 0.0
  %v611 = vmax.f32 %v483, 0.0
  %v612 = vmax.f32 %v488, 0.0
  %v613 = vmax.f32 %v493, 0.0
  %v614 = vmax.f32 %v498, 0.0
  %v615 = vmax.f32 %v503, 0.0
  %v616 = vmax.f32 %v508, 0.0
  %v617 = vmax.f32 %v513, 0.0
  %v618 = vmax.f32 %v518, 0.0
  %v619 = vmax.f32 %v523, 0.0
  %v620 = vmax.f32 %v528, 0.0
  %v621 = vmax.f32 %v533, 0.0
  %v622 = vmax.f32 %v538, 0.0
  %v623 = vmax.f32 %v543, 0.0
  %v624 = vmax.f32 %v548, 0.0
  %v625 = vmax.f32 %v553, 0.0
  %v626 = vmax.f32 %v558, 0.0
  %v627 = vmax.f32 %v563, 0.0
  %v628 = vmax.f32 %v568, 0.0
  %v629 = vmax.f32 %v573, 0.0
  %v630 = vmax.f32 %v578, 0.0
  %v631 = vmax.f32 %v583, 0.0
  %v632 = vmax.f32 %v588, 0.0
  %v633 = vmax.f32 %v593, 0.0
  %v634 = vmax.f32 %v598, 0.0
  %v635 = vmax.f32 %v603, 0.0
  %v636 = vld [vmem:[%s3] sm:$0xff]
  %v637 = vld [vmem:[%s3 + $0x8] sm:$0xff]
  %v638 = vld [vmem:[%s3 + $0x10] sm:$0xff]
  %v639 = vld [vmem:[%s3 + $0x18] sm:$0xff]
  %v640 = vld [vmem:[%s4] sm:$0xff]
  %v641 = vld [vmem:[%s4 + $0x8] sm:$0xff]
  %643 = vset.pattern.permute.xlu0 0
  %644 = vperm.xlu0 %643, %v640
  %v645 = vpop.permute.xlu0 %644
  %648 = vset.pattern.permute.xlu0 0
  %649 = vperm.xlu0 %648, %v641
  %v650 = vpop.permute.xlu0 %649
  %vm652 = vcmask 916480
  %v654 = vsel %vm652, %v637, 0
  %v657 = vsel %vm652, %v639, 0
  %659 = vmatprep.subr.mxu0 0.0
  %660 = vmatpush1.msra.mxu0 %v606
  %661 = vmatprep.subr.mxu0 0.0
  %662 = vmatpush1.msra.mxu0 %v607
  %663 = vmatprep.subr.mxu0 0.0
  %664 = vmatpush1.msra.mxu0 %v608
  %665 = vmatprep.subr.mxu0 0.0
  %666 = vmatpush1.msra.mxu0 %v609
  %667 = vmatprep.subr.mxu0 0.0
  %668 = vmatpush1.msra.mxu0 %v610
  %669 = vmatprep.subr.mxu0 0.0
  %670 = vmatpush1.msra.mxu0 %v611
  %671 = vmatprep.subr.mxu0 0.0
  %672 = vmatpush1.msra.mxu0 %v612
  %673 = vmatprep.subr.mxu0 0.0
  %674 = vmatpush1.msra.mxu0 %v613
  %675 = vmatprep.subr.mxu0 0.0
  %676 = vmatpush1.msra.mxu0 %v614
  %677 = vmatprep.subr.mxu0 0.0
  %678 = vmatpush1.msra.mxu0 %v615
  %679 = vmatprep.subr.mxu0 0.0
  %680 = vmatpush1.msra.mxu0 %v616
  %681 = vmatprep.subr.mxu0 0.0
  %682 = vmatpush1.msra.mxu0 %v617
  %683 = vmatprep.subr.mxu0 0.0
  %684 = vmatpush1.msra.mxu0 %v618
  %685 = vmatprep.subr.mxu0 0.0
  %686 = vmatpush1.msra.mxu0 %v619
  %687 = vmatprep.subr.mxu0 0.0
  %688 = vmatpush1.msra.mxu0 %v620
  %689 = vmatprep.subr.mxu0 0.0
  %690 = vmatpush1.msra.mxu0 %v621
  %691 = vmatprep.subr.mxu0 0.0
  %692 = vmatpush1.msra.mxu0 %v622
  %693 = vmatprep.subr.mxu0 0.0
  %694 = vmatpush1.msra.mxu0 %v623
  %695 = vmatprep.subr.mxu0 0.0
  %696 = vmatpush1.msra.mxu0 %v624
  %697 = vmatprep.subr.mxu0 0.0
  %698 = vmatpush1.msra.mxu0 %v625
  %699 = vmatprep.subr.mxu0 0.0
  %700 = vmatpush1.msra.mxu0 %v626
  %701 = vmatprep.subr.mxu0 0.0
  %702 = vmatpush1.msra.mxu0 %v627
  %703 = vmatprep.subr.mxu0 0.0
  %704 = vmatpush1.msra.mxu0 %v628
  %705 = vmatprep.subr.mxu0 0.0
  %706 = vmatpush1.msra.mxu0 %v629
  %707 = vmatprep.subr.mxu0 0.0
  %708 = vmatpush1.msra.mxu0 %v630
  %709 = vmatprep.subr.mxu0 0.0
  %710 = vmatpush1.msra.mxu0 %v631
  %711 = vmatprep.subr.mxu0 0.0
  %712 = vmatpush1.msra.mxu0 %v632
  %713 = vmatprep.subr.mxu0 0.0
  %714 = vmatpush1.msra.mxu0 %v633
  %715 = vmatprep.subr.mxu0 0.0
  %716 = vmatpush1.msra.mxu0 %v634
  %717 = vmatprep.subr.mxu0 0.0
  %718 = vmatpush1.msra.mxu0 %v635
  %719 = vmatprep.subr.mxu0 0.0
  %720 = vmatpush1.msra.mxu0 0.0
  %721 = vmatprep.subr.mxu0 0.0
  %722 = vmatpush1.msra.mxu0 0.0
  %723 = vmatprep.mubr.f32.mxu0 %v654
  %724 = vmatmul.mubr.f32.gmra.mrb[0].mxu0 %v636
  %v725 = vpop.f32.mrb[0].mxu0
  %v726 = vadd.f32 %v645, %v725
  %v727 = vpop.f32.mrb[0].mxu0
  %728 = vmatprep.mubr.f32.mxu0 %v657
  %729 = vmatmul.mubr.f32.gmra.mrb[0].mxu0 %v638
  %v730 = vpop.f32.mrb[0].mxu0
  %v731 = vadd.f32 %v650, %v730
  %v732 = vpop.f32.mrb[0].mxu0
  %733 = vdwg.mxu0
  %v734 = vmax.f32 %v726, 0.0
  %v735 = vmax.f32 %v731, 0.0
  %v736 = vld [vmem:[%s5] sm:$0xff]
  %v737 = vld [vmem:[%s6] sm:$0xff]
  %739 = vset.pattern.permute.xlu0 0
  %740 = vperm.xlu0 %739, %v737
  %v741 = vpop.permute.xlu0 %740
  %vm743 = vcmask 130048
  %v745 = vsel %vm743, %v736, 0
  %747 = vmatprep.subr.mxu0 0.0
  %748 = vmatpush1.msra.mxu0 %v734
  %749 = vmatprep.subr.mxu0 0.0
  %750 = vmatpush1.msra.mxu0 %v735
  %751 = vmatprep.subr.mxu0 0.0
  %752 = vmatpush1.msra.mxu0 0.0
  %753 = vmatprep.subr.mxu0 0.0
  %754 = vmatpush1.msra.mxu0 0.0
  %755 = vmatprep.subr.mxu0 0.0
  %756 = vmatpush1.msra.mxu0 0.0
  %757 = vmatprep.subr.mxu0 0.0
  %758 = vmatpush1.msra.mxu0 0.0
  %759 = vmatprep.subr.mxu0 0.0
  %760 = vmatpush1.msra.mxu0 0.0
  %761 = vmatprep.subr.mxu0 0.0
  %762 = vmatpush1.msra.mxu0 0.0
  %763 = vmatprep.subr.mxu0 0.0
  %764 = vmatpush1.msra.mxu0 0.0
  %765 = vmatprep.subr.mxu0 0.0
  %766 = vmatpush1.msra.mxu0 0.0
  %767 = vmatprep.subr.mxu0 0.0
  %768 = vmatpush1.msra.mxu0 0.0
  %769 = vmatprep.subr.mxu0 0.0
  %770 = vmatpush1.msra.mxu0 0.0
  %771 = vmatprep.subr.mxu0 0.0
  %772 = vmatpush1.msra.mxu0 0.0
  %773 = vmatprep.subr.mxu0 0.0
  %774 = vmatpush1.msra.mxu0 0.0
  %775 = vmatprep.subr.mxu0 0.0
  %776 = vmatpush1.msra.mxu0 0.0
  %777 = vmatprep.subr.mxu0 0.0
  %778 = vmatpush1.msra.mxu0 0.0
  %779 = vmatprep.subr.mxu0 0.0
  %780 = vmatpush1.msra.mxu0 0.0
  %781 = vmatprep.subr.mxu0 0.0
  %782 = vmatpush1.msra.mxu0 0.0
  %783 = vmatprep.subr.mxu0 0.0
  %784 = vmatpush1.msra.mxu0 0.0
  %785 = vmatprep.subr.mxu0 0.0
  %786 = vmatpush1.msra.mxu0 0.0
  %787 = vmatprep.subr.mxu0 0.0
  %788 = vmatpush1.msra.mxu0 0.0
  %789 = vmatprep.subr.mxu0 0.0
  %790 = vmatpush1.msra.mxu0 0.0
  %791 = vmatprep.subr.mxu0 0.0
  %792 = vmatpush1.msra.mxu0 0.0
  %793 = vmatprep.subr.mxu0 0.0
  %794 = vmatpush1.msra.mxu0 0.0
  %795 = vmatprep.subr.mxu0 0.0
  %796 = vmatpush1.msra.mxu0 0.0
  %797 = vmatprep.subr.mxu0 0.0
  %798 = vmatpush1.msra.mxu0 0.0
  %799 = vmatprep.subr.mxu0 0.0
  %800 = vmatpush1.msra.mxu0 0.0
  %801 = vmatprep.subr.mxu0 0.0
  %802 = vmatpush1.msra.mxu0 0.0
  %803 = vmatprep.subr.mxu0 0.0
  %804 = vmatpush1.msra.mxu0 0.0
  %805 = vmatprep.subr.mxu0 0.0
  %806 = vmatpush1.msra.mxu0 0.0
  %807 = vmatprep.subr.mxu0 0.0
  %808 = vmatpush1.msra.mxu0 0.0
  %809 = vmatprep.subr.mxu0 0.0
  %810 = vmatpush1.msra.mxu0 0.0
  %811 = vmatprep.mubr.f32.mxu0 0.0
  %812 = vmatmul.mubr.f32.gmra.mrb[0].mxu0 %v745
  %v813 = vpop.f32.mrb[0].mxu0
  %v814 = vadd.f32 %v741, %v813
  %v815 = vpop.f32.mrb[0].mxu0
  %816 = vdwg.mxu0
  %817 = vst [vmem:[%s7] sm:$0xff] %v814
  // Predicated region
  $region30: #{tpu_custom_call.1} parent=0 // pred_check
    _
  $region31: #{tpu_custom_call.1} parent=0 // pred_check_branch
    %819 = sbr.rel (0) target = $region33
  $region32: #{tpu_custom_call.1} parent=0 // pred_region
    _
  $region33: #{tpu_custom_call.1} parent=0 // pred_fallthru
    _
  // Predicated region
  $region34: #{tpu_custom_call.1} parent=0 // pred_check
    _
  $region35: #{tpu_custom_call.1} parent=0 // pred_check_branch
    %821 = sbr.rel (0) target = $region37
  $region36: #{tpu_custom_call.1} parent=0 // pred_region
    _
  $region37: #{tpu_custom_call.1} parent=0 // pred_fallthru
    _

</llo_original>
